<compile_context>
chip_gen: v7x
topology: tpu7x:2x2x1
jax: 0.10.0
libtpu: 0.0.40
codegen_flags: <defaults>
</compile_context>

<pallas_src>
import math
import functools

import jax
import jax.numpy as jnp
from jax.experimental import pallas as pl
from jax.experimental.pallas import tpu as pltpu


def _add_pe_kernel(x_ref, pe_ref, o_ref):
    # x_ref: (B, tile_n), pe_ref: (1, tile_n) -> broadcast add over batch rows.
    o_ref[...] = x_ref[...] + pe_ref[...]


def _add_pe_dropout_kernel(x_ref, pe_ref, bits_ref, o_ref, *,
                           keep_threshold, inv_keep):
    y = x_ref[...] + pe_ref[...]
    # integer-domain keep test: P(keep) = keep_threshold / 2^32 ~= 1 - p
    keep = bits_ref[...] < jnp.uint32(keep_threshold)
    scale = jnp.asarray(inv_keep, dtype=y.dtype)
    o_ref[...] = jnp.where(keep, y * scale, jnp.zeros_like(y))


def _sinusoidal_table(seq_len, dim_model, dtype):
    """Same math as the PyTorch buffer: sin on even channels, cos on odd."""
    pos = jnp.arange(seq_len, dtype=jnp.float32)[:, None]                 # (S, 1)
    div = jnp.exp(jnp.arange(0, dim_model, 2, dtype=jnp.float32)
                  * (-math.log(10000.0) / float(dim_model)))              # (ceil(D/2),)
    ang = pos * div                                                       # (S, ceil(D/2))
    pe = jnp.zeros((seq_len, dim_model), jnp.float32)
    pe = pe.at[:, 0::2].set(jnp.sin(ang))
    pe = pe.at[:, 1::2].set(jnp.cos(ang[:, : dim_model // 2]))
    return pe.astype(dtype)


def positional_encoding(token_embedding, *, dim_model, p_dropout, max_len,
                        training=False, rng_key=None):
    """dropout(token_embedding + PE[:S]) for token_embedding of shape (B, S, D)."""
    B, S, D = token_embedding.shape
    assert D == dim_model
    assert S <= max_len, "sequence length exceeds max_len"

    dtype = token_embedding.dtype
    itemsize = jnp.dtype(dtype).itemsize
    total_n = S * D

    pe_flat = _sinusoidal_table(S, D, dtype).reshape(1, total_n)
    x_flat = token_embedding.reshape(B, total_n)

    # Tile the flattened (seq*dim) axis. Blocks are lane-dense (multiple of
    # 128) unless the whole axis fits in one block. Target ~2 MiB of x per step.
    target_block_bytes = 2 * 1024 * 1024
    tile_n = max(128, (target_block_bytes // max(1, B * itemsize)) // 128 * 128)
    if tile_n >= total_n:
        tile_n = total_n
    grid = (pl.cdiv(total_n, tile_n),)

    use_dropout = bool(training) and float(p_dropout) > 0.0

    bytes_accessed = (2 * B * total_n * itemsize           # read x + write out
                      + total_n * itemsize                 # read PE table
                      + (B * total_n * 4 if use_dropout else 0))
    cost = pl.CostEstimate(flops=B * total_n, transcendentals=0,
                           bytes_accessed=bytes_accessed)

    # VMEM budget: in + out blocks (double-buffered) + PE + dropout bits.
    x_block_bytes = B * tile_n * itemsize
    per_step = (2 * x_block_bytes + tile_n * itemsize
                + (B * tile_n * 4 if use_dropout else 0))
    vmem_limit = int(min(56 * 2**20, max(32 * 2**20, 3 * per_step)))

    compiler_params = pltpu.CompilerParams(
        dimension_semantics=("parallel",),     # independent steps -> megacore OK
        vmem_limit_bytes=vmem_limit,
    )

    x_spec = pl.BlockSpec((B, tile_n), lambda i: (0, i))
    pe_spec = pl.BlockSpec((1, tile_n), lambda i: (0, i))
    out_spec = pl.BlockSpec((B, tile_n), lambda i: (0, i))
    out_shape = jax.ShapeDtypeStruct((B, total_n), dtype)

    if not use_dropout:
        out = pl.pallas_call(
            _add_pe_kernel,
            out_shape=out_shape,
            grid=grid,
            in_specs=[x_spec, pe_spec],
            out_specs=out_spec,
            compiler_params=compiler_params,
            cost_estimate=cost,
        )(x_flat, pe_flat)
    else:
        if rng_key is None:
            rng_key = jax.random.PRNGKey(0)
        # TODO(synk): the in-kernel hardware PRNG (pltpu.prng_seed /
        # prng_random_bits) would avoid streaming these bits from HBM, but it
        # has no CPU/interpret lowering, so the mask bits are pregenerated.
        bits = jax.random.bits(rng_key, (B, total_n), dtype=jnp.uint32)
        p = float(p_dropout)
        keep_threshold = min((1 << 32) - 1, int(round((1.0 - p) * float(1 << 32))))
        kernel = functools.partial(_add_pe_dropout_kernel,
                                   keep_threshold=keep_threshold,
                                   inv_keep=1.0 / (1.0 - p))
        bits_spec = pl.BlockSpec((B, tile_n), lambda i: (0, i))
        out = pl.pallas_call(
            kernel,
            out_shape=out_shape,
            grid=grid,
            in_specs=[x_spec, pe_spec, bits_spec],
            out_specs=out_spec,
            compiler_params=compiler_params,
            cost_estimate=cost,
        )(x_flat, pe_flat, bits)

    return out.reshape(B, S, D)


def _reference_eval(x, dim_model):
    """Plain-JAX reference of the PyTorch forward in eval mode (no dropout)."""
    B, S, D = x.shape
    pe = _sinusoidal_table(S, D, jnp.float32)
    return x + pe[None, :, :]


if __name__ == "__main__":
    B, S, D = 2, 8, 32
    max_len = 16
    p_dropout = 0.1

    key = jax.random.PRNGKey(0)
    kx, kd = jax.random.split(key)
    x = jax.random.normal(kx, (B, S, D), dtype=jnp.float32)

    # eval mode (dropout = identity), deterministic -> check vs reference
    out = positional_encoding(x, dim_model=D, p_dropout=p_dropout,
                              max_len=max_len, training=False)
    out = jax.block_until_ready(out)
    ref = _reference_eval(x, D)
    assert out.shape == (B, S, D)
    assert jnp.allclose(out, ref, atol=1e-5, rtol=1e-5), "mismatch vs reference"

    # training mode (inverted dropout): check surviving elements equal ref/(1-p)
    out_tr = positional_encoding(x, dim_model=D, p_dropout=p_dropout,
                                 max_len=max_len, training=True, rng_key=kd)
    out_tr = jax.block_until_ready(out_tr)
    assert out_tr.shape == (B, S, D)
    kept = out_tr != 0.0
    assert jnp.allclose(jnp.where(kept, out_tr * (1.0 - p_dropout), 0.0),
                        jnp.where(kept, ref, 0.0), atol=1e-5, rtol=1e-5)

    print("KERNEL_OK")
</pallas_src>

<mosaic_0001>
module attributes {stable_mosaic.version = 11 : i64} {
  func.func @_add_pe_kernel(%arg0: i32, %arg1: memref<2x256xf32, #tpu.memory_space<vmem>>, %arg2: memref<1x256xf32, #tpu.memory_space<vmem>>, %arg3: memref<2x256xf32, #tpu.memory_space<vmem>>) attributes {dimension_semantics = [#tpu.dimension_semantics<parallel>], iteration_bounds = array<i64: 1>, scalar_prefetch = 0 : i64, scratch_operands = 0 : i64, tpu.core_type = #tpu.core_type<tc>, window_params = [{transform_indices = @transform_0, window_bounds = array<i64: 2, 256>}, {transform_indices = @transform_1, window_bounds = array<i64: 1, 256>}, {transform_indices = @transform_2, window_bounds = array<i64: 2, 256>}]} {
    %c0 = arith.constant 0 : index
    %c0_0 = arith.constant 0 : index
    %0 = vector.load %arg1[%c0, %c0_0] : memref<2x256xf32, #tpu.memory_space<vmem>>, vector<2x256xf32>
    %c0_1 = arith.constant 0 : index
    %c0_2 = arith.constant 0 : index
    %1 = vector.load %arg2[%c0_1, %c0_2] : memref<1x256xf32, #tpu.memory_space<vmem>>, vector<1x256xf32>
    %2 = vector.broadcast %1 : vector<1x256xf32> to vector<2x256xf32>
    %3 = arith.addf %0, %2 : vector<2x256xf32>
    %c0_3 = arith.constant 0 : index
    %c0_4 = arith.constant 0 : index
    %4 = vector.load %arg3[%c0_3, %c0_4] : memref<2x256xf32, #tpu.memory_space<vmem>>, vector<2x256xf32>
    tpu.vector_store %arg3[%c0_3, %c0_4], %3 {strides = array<i32>} : memref<2x256xf32, #tpu.memory_space<vmem>>, vector<2x256xf32>,
    return
  }
  func.func @transform_0(%arg0: i32) -> (i32, i32) {
    %c0_i32 = arith.constant 0 : i32
    %c0_i32_0 = arith.constant 0 : i32
    return %c0_i32, %arg0 : i32, i32
  }
  func.func @transform_1(%arg0: i32) -> (i32, i32) {
    %c0_i32 = arith.constant 0 : i32
    %c0_i32_0 = arith.constant 0 : i32
    return %c0_i32, %arg0 : i32, i32
  }
  func.func @transform_2(%arg0: i32) -> (i32, i32) {
    %c0_i32 = arith.constant 0 : i32
    %c0_i32_0 = arith.constant 0 : i32
    return %c0_i32, %arg0 : i32, i32
  }
}

</mosaic_0001>

<llo_original>
// kernel: tpu_custom_call.1
$region0: #{tpu_custom_call.1}
  #allocation0 [shape = 'u32[]', space=smem, size = 0x4, offset = 0x4, fixed_abs, tag = 'smem constant byte address 0x4 - core index']
  #allocation1 [shape = 'u32[144,128]{1,0:T(1,128)}', space=vmem, size = 0x12000, scoped, tag = 'internal scratch']
  %s0 = inlined_call_operand.hbm [shape: f32[2,256], index: 0, kind: input, shape index: {}]
  %s1 = inlined_call_operand.vmem [shape: f32[1,256], index: 1, kind: input, shape index: {}]
  %s2 = inlined_call_operand.hbm [shape: f32[2,256], index: 2, kind: output, shape index: {}]
  %s3 = sld [smem:[#allocation0]]
  $region22: #{tpu_custom_call.1} parent=0
    _
  %s5 = ssub.s32 1, %s3
  %s6 = scalar_select 0, %s5, %s3
  $region1: #{tpu_custom_call.1} parent=0
    #allocation2 [shape = 'u8[2048]{0}', space=vmem, size = 0x800, scoped, tag = 'input window, operand 0, single buffered']
    #allocation3 [shape = 's32[1]{0}', space=sflag, size = 0x4, scoped, tag = 'scoped memory for tpu_custom_call.1']
    #allocation4 [shape = 's32[1]{0}', space=sflag, size = 0x4, scoped, tag = 'scoped memory for tpu_custom_call.1']
    #allocation5 [shape = 'u8[2048]{0}', space=vmem, size = 0x800, scoped, tag = 'output window, operand 0, single buffered']
    %7 = vsyncpa [#allocation3], 0
    %8 = vsyncpa [#allocation4], 0
    // Predicated region
    $region2: #{tpu_custom_call.1} parent=1 // pred_check
      _
    $region3: #{tpu_custom_call.1} parent=1 // pred_check_branch
      %10 = sbr.rel (0) target = $region5
    $region4: #{tpu_custom_call.1} parent=1 // pred_region
      %s12 = ssub.s32 64, 64
      %13 = vsyncadd [#allocation3], %s12
      %s15 = sshll.u32 [#allocation2], 4
      %s16 = int_to_ptr.vmem [resolvable:$true] %s15
      %18 = dma.hbm_to_vmem [thread:$0]  %s0, 64, %s16, [#allocation3]
    $region5: #{tpu_custom_call.1} parent=1 // pred_fallthru
      _
    // Predicated region
    $region6: #{tpu_custom_call.1} parent=1 // pred_check
      _
    $region7: #{tpu_custom_call.1} parent=1 // pred_check_branch
      %20 = sbr.rel (0) target = $region9
    $region8: #{tpu_custom_call.1} parent=1 // pred_region
      _
    $region9: #{tpu_custom_call.1} parent=1 // pred_fallthru
      _
    // Predicated region
    $region10: #{tpu_custom_call.1} parent=1 // pred_check
      _
    $region11: #{tpu_custom_call.1} parent=1 // pred_check_branch
      %22 = sbr.rel (0) target = $region13
    $region12: #{tpu_custom_call.1} parent=1 // pred_region
      %23 = dma.done [#allocation3], 64
    $region13: #{tpu_custom_call.1} parent=1 // pred_fallthru
      _
    %v24 = vld [vmem:[#allocation2] sm:$0xf]
    %v25 = vld [vmem:[%s1] sm:$0x3]
    %v27 = vlaneseq
    %v28 = vshrl.u32 %v27, 7
    %v29 = vsub.s32 0, %v28
    %v30 = vrot.slane %v25, %v29
    %v31 = vlaneseq
    %v32 = vshrl.u32 %v31, 7
    %v33 = vsub.s32 1, %v32
    %v34 = vrot.slane %v25, %v33
    %v35 = vcombine.low %v30, %v34
    %v37 = vunpack.c.l.s4 1983009808
    %v38 = vunpack.c.0.s8 %v37
    %v39 = vlaneseq
    %v40 = vshrl.u32 %v39, 7
    %v41 = vsub.s32 %v38, %v40
    %v42 = vrot.slane %v35, %v41
    %v44 = vadd.f32 %v24, %v42
    %45 = vst [vmem:[#allocation5] sm:$0xf] %v44
    // Predicated region
    $region14: #{tpu_custom_call.1} parent=1 // pred_check
      _
    $region15: #{tpu_custom_call.1} parent=1 // pred_check_branch
      %47 = sbr.rel (0) target = $region17
    $region16: #{tpu_custom_call.1} parent=1 // pred_region
      %s49 = ssub.s32 64, 64
      %50 = vsyncadd [#allocation4], %s49
      %s52 = sshll.u32 [#allocation5], 4
      %s53 = int_to_ptr.vmem [resolvable:$true] %s52
      %55 = dma.vmem_to_hbm [thread:$0]  %s53, 64, %s2, [#allocation4]
    $region17: #{tpu_custom_call.1} parent=1 // pred_fallthru
      _
    // Predicated region
    $region18: #{tpu_custom_call.1} parent=1 // pred_check
      _
    $region19: #{tpu_custom_call.1} parent=1 // pred_check_branch
      %57 = sbr.rel (0) target = $region21
    $region20: #{tpu_custom_call.1} parent=1 // pred_region
      %58 = dma.done [#allocation4], 64
    $region21: #{tpu_custom_call.1} parent=1 // pred_fallthru
      _
    %59 = vsyncpa [#allocation3], 1
    %60 = vsyncpa [#allocation4], 1

</llo_original>
